<compile_context>
chip_gen: v5e
topology: v5e:2x2
jax: 0.10.0
libtpu: 0.0.40
codegen_flags: <defaults>
</compile_context>

<pallas_src>
import jax
import jax.numpy as jnp
from jax import lax
from jax.experimental import pallas as pl
from jax.experimental.pallas import tpu as pltpu


def _round_up(n, m):
    return ((n + m - 1) // m) * m


def _make_kernel(p, training, matmul_dtype):
    p = float(p)
    apply_dropout = bool(training) and p > 0.0
    scale = 1.0 / (1.0 - p) if apply_dropout else 1.0

    def kernel(*refs):
        if apply_dropout:
            x_ref, u_ref, w_ref, b_ref, out_ref, acc_ref = refs
        else:
            x_ref, w_ref, b_ref, out_ref, acc_ref = refs

        @pl.when(pl.program_id(2) == 0)
        def _():
            acc_ref[...] = jnp.zeros_like(acc_ref)

        x = x_ref[...]                                   # (tm, tk) f32
        if apply_dropout:
            # Inverted dropout (PyTorch semantics): keep w.p. (1-p), scale 1/(1-p).
            keep = u_ref[...] >= jnp.float32(p)
            x = jnp.where(keep, x * jnp.float32(scale), jnp.zeros_like(x))

        # Linear: contract x (tm, tk) with PyTorch-layout weight tile (tn, tk)
        # over K -> (tm, tn).  bf16 MXU operands, f32 accumulation.
        acc_ref[...] += lax.dot_general(
            x.astype(matmul_dtype), w_ref[...],
            dimension_numbers=(((1,), (1,)), ((), ())),
            preferred_element_type=jnp.float32)

        @pl.when(pl.program_id(2) == pl.num_programs(2) - 1)
        def _():
            out_ref[...] = (acc_ref[...] + b_ref[...]).astype(out_ref.dtype)

    return kernel, apply_dropout


def classifier_forward(x, weight, bias, *, p=0.5, training=True, rng_key=None,
                       matmul_dtype=jnp.bfloat16):
    """x: (B, D) f32; weight: (O, D) PyTorch layout; bias: (O,)."""
    B, D = x.shape
    O, Dw = weight.shape
    assert Dw == D

    # Tile sizes: lane-dense (>=128) N axis, 8-aligned M, 128-aligned K.
    tm = min(_round_up(B, 8), 256)
    tn = min(_round_up(O, 128), 256)
    tk = min(_round_up(D, 128), 512)
    Bp, Op, Dp = _round_up(B, tm), _round_up(O, tn), _round_up(D, tk)

    x_p = jnp.pad(x, ((0, Bp - B), (0, Dp - D)))
    w_p = jnp.pad(weight, ((0, Op - O), (0, Dp - D))).astype(matmul_dtype)
    b_p = jnp.pad(bias, (0, Op - O)).reshape(1, Op).astype(jnp.float32)

    kernel, apply_dropout = _make_kernel(p, training, matmul_dtype)

    in_specs = [pl.BlockSpec((tm, tk), lambda i, j, k: (i, k))]   # activations
    inputs = [x_p]
    if apply_dropout:
        if rng_key is None:
            rng_key = jax.random.PRNGKey(0)
        # Uniform[0,1) decision variables generated host-side so the kernel
        # lowers on both real TPU and interpret mode (TPU HW PRNG has no CPU
        # lowering).  Padded region of x is zero so its mask is irrelevant.
        # TODO(synk): mask is deterministic given rng_key but not bit-identical
        # to torch's RNG stream (statistics match).
        u = jax.random.uniform(rng_key, (Bp, Dp), dtype=jnp.float32)
        in_specs.append(pl.BlockSpec((tm, tk), lambda i, j, k: (i, k)))
        inputs.append(u)
    in_specs += [
        pl.BlockSpec((tn, tk), lambda i, j, k: (j, k)),           # weight (O, D)
        pl.BlockSpec((1, tn), lambda i, j, k: (0, j)),            # bias
    ]
    inputs += [w_p, b_p]

    grid = (Bp // tm, Op // tn, Dp // tk)

    out = pl.pallas_call(
        kernel,
        out_shape=jax.ShapeDtypeStruct((Bp, Op), x.dtype),
        grid_spec=pltpu.PrefetchScalarGridSpec(
            num_scalar_prefetch=0,
            grid=grid,
            in_specs=in_specs,
            out_specs=pl.BlockSpec((tm, tn), lambda i, j, k: (i, j)),
            scratch_shapes=[pltpu.VMEM((tm, tn), jnp.float32)],
        ),
        compiler_params=pltpu.CompilerParams(
            dimension_semantics=("parallel", "parallel", "arbitrary")),
    )(*inputs)

    return out[:B, :O]


if __name__ == "__main__":
    key = jax.random.PRNGKey(0)
    k_x, k_w, k_b, k_drop = jax.random.split(key, 4)

    batch, input_dim, output_dim = 8, 32, 16
    x = jax.random.normal(k_x, (batch, input_dim), dtype=jnp.float32)
    # torch.nn.Linear-style init: uniform(-1/sqrt(fan_in), 1/sqrt(fan_in))
    bound = 1.0 / (input_dim ** 0.5)
    weight = jax.random.uniform(k_w, (output_dim, input_dim), jnp.float32, -bound, bound)
    bias = jax.random.uniform(k_b, (output_dim,), jnp.float32, -bound, bound)

    # Eval-mode forward (dropout = identity): cross-check against a plain JAX
    # reference computed with the same bf16-operand / f32-accumulate matmul.
    y_eval = classifier_forward(x, weight, bias, p=0.5, training=False)
    y_eval = jax.block_until_ready(y_eval)
    y_ref = jnp.dot(x.astype(jnp.bfloat16), weight.T.astype(jnp.bfloat16),
                    preferred_element_type=jnp.float32) + bias
    assert y_eval.shape == (batch, output_dim)
    assert jnp.allclose(y_eval, y_ref, atol=1e-3, rtol=1e-3), \
        float(jnp.max(jnp.abs(y_eval - y_ref)))

    # Training-mode forward (Dropout p=0.5 active, deterministic mask from k_drop).
    y_train = classifier_forward(x, weight, bias, p=0.5, training=True, rng_key=k_drop)
    y_train = jax.block_until_ready(y_train)
    assert y_train.shape == (batch, output_dim)
    assert bool(jnp.all(jnp.isfinite(y_train)))

    print("KERNEL_OK")
</pallas_src>

<mosaic_0001>
module attributes {stable_mosaic.version = 11 : i64} {
  func.func @kernel(%arg0: i32, %arg1: i32, %arg2: i32, %arg3: memref<8x128xf32, #tpu.memory_space<vmem>>, %arg4: memref<128x128xbf16, #tpu.memory_space<vmem>>, %arg5: memref<1x128xf32, #tpu.memory_space<vmem>>, %arg6: memref<8x128xf32, #tpu.memory_space<vmem>>, %arg7: memref<8x128xf32, #tpu.memory_space<vmem>>) attributes {dimension_semantics = [#tpu.dimension_semantics<parallel>, #tpu.dimension_semantics<parallel>, #tpu.dimension_semantics<arbitrary>], iteration_bounds = array<i64: 1, 1, 1>, scalar_prefetch = 0 : i64, scratch_operands = 1 : i64, tpu.core_type = #tpu.core_type<tc>, window_params = [{transform_indices = @transform_0, window_bounds = array<i64: 8, 128>}, {transform_indices = @transform_1, window_bounds = array<i64: 128, 128>}, {transform_indices = @transform_2, window_bounds = array<i64: 1, 128>}, {transform_indices = @transform_3, window_bounds = array<i64: 8, 128>}]} {
    %c0_i32 = arith.constant 0 : i32
    %0 = arith.cmpi eq, %arg2, %c0_i32 : i32
    %1 = arith.extui %0 : i1 to i32
    %c0_i32_0 = arith.constant 0 : i32
    %2 = arith.cmpi ne, %1, %c0_i32_0 : i32
    scf.if %2 {
      %cst_10 = arith.constant 0.000000e+00 : f32
      %13 = vector.broadcast %cst_10 : f32 to vector<8x128xf32>
      %c0_11 = arith.constant 0 : index
      %c0_12 = arith.constant 0 : index
      %14 = vector.load %arg7[%c0_11, %c0_12] : memref<8x128xf32, #tpu.memory_space<vmem>>, vector<8x128xf32>
      tpu.vector_store %arg7[%c0_11, %c0_12], %13 {strides = array<i32>} : memref<8x128xf32, #tpu.memory_space<vmem>>, vector<8x128xf32>,
    } else {
    }
    %c0 = arith.constant 0 : index
    %c0_1 = arith.constant 0 : index
    %3 = vector.load %arg3[%c0, %c0_1] : memref<8x128xf32, #tpu.memory_space<vmem>>, vector<8x128xf32>
    %c0_2 = arith.constant 0 : index
    %c0_3 = arith.constant 0 : index
    %4 = vector.load %arg7[%c0_2, %c0_3] : memref<8x128xf32, #tpu.memory_space<vmem>>, vector<8x128xf32>
    %5 = arith.truncf %3 : vector<8x128xf32> to vector<8x128xbf16>
    %c0_4 = arith.constant 0 : index
    %c0_5 = arith.constant 0 : index
    %6 = vector.load %arg4[%c0_4, %c0_5] : memref<128x128xbf16, #tpu.memory_space<vmem>>, vector<128x128xbf16>
    %cst = arith.constant dense<0.000000e+00> : vector<8x128xf32>
    %7 = tpu.matmul %5, %6, %cst {dimension_numbers = #tpu.dot_dimension_numbers<[1], [1], [0], [0], [0, 0, 1, 0], [], []>} : vector<8x128xbf16>, vector<128x128xbf16>, vector<8x128xf32> -> vector<8x128xf32>
    %8 = arith.addf %4, %7 : vector<8x128xf32>
    %c0_6 = arith.constant 0 : index
    %c0_7 = arith.constant 0 : index
    %9 = vector.load %arg7[%c0_6, %c0_7] : memref<8x128xf32, #tpu.memory_space<vmem>>, vector<8x128xf32>
    tpu.vector_store %arg7[%c0_6, %c0_7], %8 {strides = array<i32>} : memref<8x128xf32, #tpu.memory_space<vmem>>, vector<8x128xf32>,
    %c0_i32_8 = arith.constant 0 : i32
    %10 = arith.cmpi eq, %arg2, %c0_i32_8 : i32
    %11 = arith.extui %10 : i1 to i32
    %c0_i32_9 = arith.constant 0 : i32
    %12 = arith.cmpi ne, %11, %c0_i32_9 : i32
    scf.if %12 {
      %c0_10 = arith.constant 0 : index
      %c0_11 = arith.constant 0 : index
      %13 = vector.load %arg7[%c0_10, %c0_11] : memref<8x128xf32, #tpu.memory_space<vmem>>, vector<8x128xf32>
      %c0_12 = arith.constant 0 : index
      %c0_13 = arith.constant 0 : index
      %14 = vector.load %arg5[%c0_12, %c0_13] : memref<1x128xf32, #tpu.memory_space<vmem>>, vector<1x128xf32>
      %15 = vector.broadcast %14 : vector<1x128xf32> to vector<8x128xf32>
      %16 = arith.addf %13, %15 : vector<8x128xf32>
      %c0_14 = arith.constant 0 : index
      %c0_15 = arith.constant 0 : index
      %17 = vector.load %arg6[%c0_14, %c0_15] : memref<8x128xf32, #tpu.memory_space<vmem>>, vector<8x128xf32>
      tpu.vector_store %arg6[%c0_14, %c0_15], %16 {strides = array<i32>} : memref<8x128xf32, #tpu.memory_space<vmem>>, vector<8x128xf32>,
    } else {
    }
    return
  }
  func.func @transform_0(%arg0: i32, %arg1: i32, %arg2: i32) -> (i32, i32) {
    %c0_i32 = arith.constant 0 : i32
    return %arg0, %arg2 : i32, i32
  }
  func.func @transform_1(%arg0: i32, %arg1: i32, %arg2: i32) -> (i32, i32) {
    %c0_i32 = arith.constant 0 : i32
    return %arg1, %arg2 : i32, i32
  }
  func.func @transform_2(%arg0: i32, %arg1: i32, %arg2: i32) -> (i32, i32) {
    %c0_i32 = arith.constant 0 : i32
    %c0_i32_0 = arith.constant 0 : i32
    return %c0_i32, %arg1 : i32, i32
  }
  func.func @transform_3(%arg0: i32, %arg1: i32, %arg2: i32) -> (i32, i32) {
    %c0_i32 = arith.constant 0 : i32
    return %arg0, %arg1 : i32, i32
  }
}

</mosaic_0001>

<llo_original>
// kernel: tpu_custom_call.1
$region0: #{tpu_custom_call.1}
  #allocation0 [shape = 'u32[]', space=smem, size = 0x4, offset = 0x4, fixed_abs, tag = 'smem constant byte address 0x4 - core index']
  #allocation1 [shape = 'u32[72,128]{1,0:T(1,128)}', space=vmem, size = 0x9000, scoped, tag = 'internal scratch']
  #allocation2 [shape = 'f32[8,128]{1,0:T(8,128)}', space=vmem, size = 0x1000, scoped, tag = 'scratch operand']
  %s0 = inlined_call_operand.hbm [shape: f32[8,128], index: 0, kind: input, shape index: {}]
  %s1 = inlined_call_operand.hbm [shape: bf16[128,128], index: 1, kind: input, shape index: {}]
  %s2 = inlined_call_operand.vmem [shape: f32[1,128], index: 2, kind: input, shape index: {}]
  %s3 = inlined_call_operand.hbm [shape: f32[8,128], index: 3, kind: output, shape index: {}]
  %s4 = sld [smem:[#allocation0]]
  $region38: #{tpu_custom_call.1} parent=0
    _
  %s6 = ssub.s32 1, %s4
  %s7 = scalar_select 0, %s6, %s4
  $region1: #{tpu_custom_call.1} parent=0
    #allocation3 [shape = 'u8[4096]{0}', space=vmem, size = 0x1000, scoped, tag = 'input window, operand 0, single buffered']
    #allocation4 [shape = 's32[1]{0}', space=sflag, size = 0x4, scoped, tag = 'scoped memory for tpu_custom_call.1']
    #allocation5 [shape = 's32[1]{0}', space=sflag, size = 0x4, scoped, tag = 'scoped memory for tpu_custom_call.1']
    #allocation6 [shape = 'u8[32768]{0}', space=vmem, size = 0x8000, scoped, tag = 'input window, operand 1, single buffered']
    #allocation7 [shape = 's32[1]{0}', space=sflag, size = 0x4, scoped, tag = 'scoped memory for tpu_custom_call.1']
    #allocation8 [shape = 'u8[4096]{0}', space=vmem, size = 0x1000, scoped, tag = 'output window, operand 0, single buffered']
    %8 = vsyncpa [#allocation4], 0
    %9 = vsyncpa [#allocation7], 0
    %10 = vsyncpa [#allocation5], 0
    // Predicated region
    $region2: #{tpu_custom_call.1} parent=1 // pred_check
      _
    $region3: #{tpu_custom_call.1} parent=1 // pred_check_branch
      %12 = sbr.rel (0) target = $region5
    $region4: #{tpu_custom_call.1} parent=1 // pred_region
      %14 = vsyncadd [#allocation4], 0
      %s16 = sshll.u32 %s0, 4
      %s17 = int_to_ptr.hbm [resolvable:$true] %s16
      %s18 = sshll.u32 [#allocation3], 4
      %s19 = int_to_ptr.vmem [resolvable:$true] %s18
      %21 = dma.hbm_to_vmem [thread:$0]  %s17, 128, %s19, [#allocation4]
    $region5: #{tpu_custom_call.1} parent=1 // pred_fallthru
      _
    // Predicated region
    $region6: #{tpu_custom_call.1} parent=1 // pred_check
      _
    $region7: #{tpu_custom_call.1} parent=1 // pred_check_branch
      %23 = sbr.rel (0) target = $region9
    $region8: #{tpu_custom_call.1} parent=1 // pred_region
      %25 = vsyncadd [#allocation7], 0
      %s26 = sshll.u32 %s1, 4
      %s27 = int_to_ptr.hbm [resolvable:$true] %s26
      %s28 = sshll.u32 [#allocation6], 4
      %s29 = int_to_ptr.vmem [resolvable:$true] %s28
      %34 = dma.hbm_to_vmem [thread:$0]  %s27, 1024, %s29, [#allocation7], 64, 64, 4
    $region9: #{tpu_custom_call.1} parent=1 // pred_fallthru
      _
    // Predicated region
    $region10: #{tpu_custom_call.1} parent=1 // pred_check
      _
    $region11: #{tpu_custom_call.1} parent=1 // pred_check_branch
      %36 = sbr.rel (0) target = $region13
    $region12: #{tpu_custom_call.1} parent=1 // pred_region
      _
    $region13: #{tpu_custom_call.1} parent=1 // pred_fallthru
      _
    // Predicated region
    $region14: #{tpu_custom_call.1} parent=1 // pred_check
      _
    $region15: #{tpu_custom_call.1} parent=1 // pred_check_branch
      %38 = sbr.rel (0) target = $region17
    $region16: #{tpu_custom_call.1} parent=1 // pred_region
      %40 = dma.done [#allocation4], 128
    $region17: #{tpu_custom_call.1} parent=1 // pred_fallthru
      _
    // Predicated region
    $region18: #{tpu_custom_call.1} parent=1 // pred_check
      _
    $region19: #{tpu_custom_call.1} parent=1 // pred_check_branch
      %42 = sbr.rel (0) target = $region21
    $region20: #{tpu_custom_call.1} parent=1 // pred_region
      %44 = dma.done [#allocation7], 1024
    $region21: #{tpu_custom_call.1} parent=1 // pred_fallthru
      _
    %p45 = scmp.eq.s32.totalorder 0, 0
    // Predicated region
    $region22: #{tpu_custom_call.1} parent=1 // pred_check
      %p46 = pneg %p45
    $region23: #{tpu_custom_call.1} parent=1 // pred_check_branch
      %48 = sbr.rel (%p46) target = $region25
    $region24: #{tpu_custom_call.1} parent=1 // pred_region
      %49 = vst [vmem:[#allocation2] sm:$0xff] 0.0
    $region25: #{tpu_custom_call.1} parent=1 // pred_fallthru
      _
    %v50 = vld [vmem:[#allocation3] sm:$0xff]
    %v51 = vld [vmem:[#allocation2] sm:$0xff]
    %v52 = vpack.c.bf16 %v50, %v50
    %v53 = vld [vmem:[#allocation6] sm:$0xf]
    %v54 = vld [vmem:[#allocation6 + $0x4] sm:$0xf]
    %v55 = vld [vmem:[#allocation6 + $0x8] sm:$0xf]
    %v56 = vld [vmem:[#allocation6 + $0xc] sm:$0xf]
    %v57 = vld [vmem:[#allocation6 + $0x10] sm:$0xf]
    %v58 = vld [vmem:[#allocation6 + $0x14] sm:$0xf]
    %v59 = vld [vmem:[#allocation6 + $0x18] sm:$0xf]
    %v60 = vld [vmem:[#allocation6 + $0x1c] sm:$0xf]
    %v61 = vld [vmem:[#allocation6 + $0x20] sm:$0xf]
    %v62 = vld [vmem:[#allocation6 + $0x24] sm:$0xf]
    %v63 = vld [vmem:[#allocation6 + $0x28] sm:$0xf]
    %v64 = vld [vmem:[#allocation6 + $0x2c] sm:$0xf]
    %v65 = vld [vmem:[#allocation6 + $0x30] sm:$0xf]
    %v66 = vld [vmem:[#allocation6 + $0x34] sm:$0xf]
    %v67 = vld [vmem:[#allocation6 + $0x38] sm:$0xf]
    %v68 = vld [vmem:[#allocation6 + $0x3c] sm:$0xf]
    %v85 = vunpack.c.l.b16 %v53
    %v86 = vunpack.c.l.b16 %v54
    %v87 = vunpack.c.l.b16 %v55
    %v88 = vunpack.c.l.b16 %v56
    %v89 = vunpack.c.l.b16 %v57
    %v90 = vunpack.c.l.b16 %v58
    %v91 = vunpack.c.l.b16 %v59
    %v92 = vunpack.c.l.b16 %v60
    %v93 = vunpack.c.l.b16 %v61
    %v94 = vunpack.c.l.b16 %v62
    %v95 = vunpack.c.l.b16 %v63
    %v96 = vunpack.c.l.b16 %v64
    %v97 = vunpack.c.l.b16 %v65
    %v98 = vunpack.c.l.b16 %v66
    %v99 = vunpack.c.l.b16 %v67
    %v100 = vunpack.c.l.b16 %v68
    %v101 = vpack.c.b16 %v86, %v85
    %v102 = vpack.c.b16 %v88, %v87
    %v103 = vpack.c.b16 %v90, %v89
    %v104 = vpack.c.b16 %v92, %v91
    %v105 = vpack.c.b16 %v94, %v93
    %v106 = vpack.c.b16 %v96, %v95
    %v107 = vpack.c.b16 %v98, %v97
    %v108 = vpack.c.b16 %v100, %v99
    %117 = vmatpush.bf16.xpose.msra.mxu0 %v108
    %118 = vmatpush.bf16.xpose.msra.mxu0 %v107
    %119 = vmatpush.bf16.xpose.msra.mxu0 %v106
    %120 = vmatpush.bf16.xpose.msra.mxu0 %v105
    %121 = vmatpush.bf16.xpose.msra.mxu0 %v104
    %122 = vmatpush.bf16.xpose.msra.mxu0 %v103
    %123 = vmatpush.bf16.xpose.msra.mxu0 %v102
    %124 = vmatpush.bf16.xpose.msra.mxu0 %v101
    %125 = vmatmul.bf16.gmra.mxu0 %v52
    %v126 = vpop.f32.mrf.mxu0
    %v127 = vadd.f32 0.0, %v126
    %v128 = vpop.f32.mrf.mxu0
    %129 = vdwg.mxu0
    %v130 = vadd.f32 %v51, %v127
    %131 = vst [vmem:[#allocation2] sm:$0xff] %v130
    // Predicated region
    $region26: #{tpu_custom_call.1} parent=1 // pred_check
      %p132 = pneg %p45
    $region27: #{tpu_custom_call.1} parent=1 // pred_check_branch
      %134 = sbr.rel (%p132) target = $region29
    $region28: #{tpu_custom_call.1} parent=1 // pred_region
      %v135 = vld [vmem:[#allocation2] sm:$0xff]
      %v136 = vld [vmem:[%s2] sm:$0x1]
      %v138 = vperm.slane %v136, 0
      %v140 = vadd.f32 %v135, %v138
      %141 = vst [vmem:[#allocation8] sm:$0xff] %v140
    $region29: #{tpu_custom_call.1} parent=1 // pred_fallthru
      _
    // Predicated region
    $region30: #{tpu_custom_call.1} parent=1 // pred_check
      _
    $region31: #{tpu_custom_call.1} parent=1 // pred_check_branch
      %143 = sbr.rel (0) target = $region33
    $region32: #{tpu_custom_call.1} parent=1 // pred_region
      %145 = vsyncadd [#allocation5], 0
      %s147 = sshll.u32 [#allocation8], 4
      %s148 = int_to_ptr.vmem [resolvable:$true] %s147
      %s149 = sshll.u32 %s3, 4
      %s150 = int_to_ptr.hbm [resolvable:$true] %s149
      %152 = dma.vmem_to_hbm [thread:$0]  %s148, 128, %s150, [#allocation5]
    $region33: #{tpu_custom_call.1} parent=1 // pred_fallthru
      _
    // Predicated region
    $region34: #{tpu_custom_call.1} parent=1 // pred_check
      _
    $region35: #{tpu_custom_call.1} parent=1 // pred_check_branch
      %154 = sbr.rel (0) target = $region37
    $region36: #{tpu_custom_call.1} parent=1 // pred_region
      %156 = dma.done [#allocation5], 128
    $region37: #{tpu_custom_call.1} parent=1 // pred_fallthru
      _
    %157 = vsyncpa [#allocation4], 1
    %158 = vsyncpa [#allocation7], 1
    %159 = vsyncpa [#allocation5], 1

</llo_original>
